<compile_context>
chip_gen: v7x
topology: tpu7x:2x2x1
jax: 0.10.0
libtpu: 0.0.40
codegen_flags: <defaults>
</compile_context>

<pallas_src>
import math
from functools import partial

import jax
import jax.numpy as jnp
from jax import lax
from jax.experimental import pallas as pl
from jax.experimental.pallas import tpu as pltpu


def _tile(dim, target):
    """Pick (block, padded_dim). Full-dim blocks when small (no (8,128)
    alignment issue, no padding); otherwise tile at `target` (8/128-aligned)
    and pad the dim up to a multiple of the tile."""
    if dim <= target:
        return dim, dim
    return target, pl.cdiv(dim, target) * target


# ----------------------------------------------------------------------------
# Kernel 1: tiled dense projection  y = x @ W + b   (in_proj and out_proj)
# ----------------------------------------------------------------------------
def _linear_kernel(x_ref, w_ref, b_ref, o_ref, acc_ref):
    k = pl.program_id(2)

    @pl.when(k == 0)
    def _():
        acc_ref[...] = jnp.zeros(acc_ref.shape, jnp.float32)

    acc_ref[...] += jnp.dot(
        x_ref[...].astype(jnp.bfloat16),
        w_ref[...].astype(jnp.bfloat16),
        preferred_element_type=jnp.float32,
    )

    @pl.when(k == pl.num_programs(2) - 1)
    def _():
        o_ref[...] = (acc_ref[...] + b_ref[...]).astype(o_ref.dtype)


def linear(x, w, b, *, tm=256, tn=256, tk=512):
    M, K = x.shape
    _, N = w.shape

    bm, Mp = _tile(M, tm)
    bn, Np = _tile(N, tn)
    bk, Kp = _tile(K, tk)

    xp = x if (Mp == M and Kp == K) else jnp.pad(x, ((0, Mp - M), (0, Kp - K)))
    wp = w if (Kp == K and Np == N) else jnp.pad(w, ((0, Kp - K), (0, Np - N)))
    bp = (b if Np == N else jnp.pad(b, (0, Np - N))).reshape(1, Np)

    out = pl.pallas_call(
        _linear_kernel,
        out_shape=jax.ShapeDtypeStruct((Mp, Np), x.dtype),
        grid=(Mp // bm, Np // bn, Kp // bk),
        in_specs=[
            pl.BlockSpec((bm, bk), lambda i, j, k: (i, k)),
            pl.BlockSpec((bk, bn), lambda i, j, k: (k, j)),
            pl.BlockSpec((1, bn), lambda i, j, k: (0, j)),
        ],
        out_specs=pl.BlockSpec((bm, bn), lambda i, j, k: (i, j)),
        scratch_shapes=[pltpu.VMEM((bm, bn), jnp.float32)],
        compiler_params=pltpu.CompilerParams(
            dimension_semantics=("parallel", "parallel", "arbitrary")),
        cost_estimate=pl.CostEstimate(
            flops=2 * Mp * Np * Kp,
            transcendentals=0,
            bytes_accessed=(Mp * Kp + Kp * Np + Mp * Np) * x.dtype.itemsize),
    )(xp, wp, bp)

    if Mp != M or Np != N:
        out = out[:M, :N]
    return out


# ----------------------------------------------------------------------------
# Kernel 2: flash attention (online softmax), per (batch*head)
#   grid = (B*H, S//ts, S//ts), kv axis trailing/"arbitrary"; q/k/v are read
#   from ONE packed (3, B*H, S, D) array via per-input index maps.
# ----------------------------------------------------------------------------
def _flash_attn_kernel(q_ref, k_ref, v_ref, o_ref, m_sc, l_sc, acc_sc, *,
                       kv_len, block_kv, need_mask):
    ki = pl.program_id(2)

    @pl.when(ki == 0)
    def _():
        m_sc[...] = jnp.full(m_sc.shape, -jnp.inf, jnp.float32)
        l_sc[...] = jnp.zeros(l_sc.shape, jnp.float32)
        acc_sc[...] = jnp.zeros(acc_sc.shape, jnp.float32)

    q = q_ref[0, 0].astype(jnp.bfloat16)        # (tq, D); 1/sqrt(D) pre-folded
    k = k_ref[0, 0].astype(jnp.bfloat16)        # (tk, D)
    v = v_ref[0, 0].astype(jnp.bfloat16)        # (tk, D)

    # Contract the last dims directly: no explicit transpose of k.
    s = lax.dot_general(q, k, (((1,), (1,)), ((), ())),
                        preferred_element_type=jnp.float32)      # (tq, tk)

    if need_mask:  # trace-time branch: only emitted when S was padded
        col = ki * block_kv + lax.broadcasted_iota(jnp.int32, s.shape, 1)
        s = jnp.where(col < kv_len, s, -jnp.inf)

    m_prev = m_sc[...]
    m_new = jnp.maximum(m_prev, s.max(axis=-1, keepdims=True))
    alpha = jnp.exp(m_prev - m_new)
    p = jnp.exp(s - m_new)
    l_sc[...] = alpha * l_sc[...] + p.sum(axis=-1, keepdims=True)
    acc_sc[...] = alpha * acc_sc[...] + jnp.dot(
        p.astype(jnp.bfloat16), v, preferred_element_type=jnp.float32)
    m_sc[...] = m_new

    @pl.when(ki == pl.num_programs(2) - 1)
    def _():
        o_ref[0] = (acc_sc[...] *
                    pl.reciprocal(l_sc[...], approx=True)).astype(o_ref.dtype)
    # TODO(synk): attn_mask (baddbmm additive-mask path) not wired in; the
    # module is exercised with attn_mask=None in this setup.


def flash_attention(qkv, *, block_seq=128):
    # qkv: (3, B*H, S, D) packed [q | k | v]; query scaling already folded in.
    _, BH, S, D = qkv.shape
    ts, Sp = _tile(S, block_seq)
    if Sp != S:
        qkv = jnp.pad(qkv, ((0, 0), (0, 0), (0, Sp - S), (0, 0)))
    n_seq = Sp // ts

    kernel = partial(_flash_attn_kernel, kv_len=S, block_kv=ts,
                     need_mask=(Sp != S))

    out = pl.pallas_call(
        kernel,
        out_shape=jax.ShapeDtypeStruct((BH, Sp, D), qkv.dtype),
        grid=(BH, n_seq, n_seq),
        in_specs=[
            # q / k / v all stream out of the same packed qkv array.
            pl.BlockSpec((1, 1, ts, D), lambda bh, qi, ki: (0, bh, qi, 0)),
            pl.BlockSpec((1, 1, ts, D), lambda bh, qi, ki: (1, bh, ki, 0)),
            pl.BlockSpec((1, 1, ts, D), lambda bh, qi, ki: (2, bh, ki, 0)),
            # TODO(synk): consider pipeline_mode=pl.Buffered(3) on the k/v specs
            # if the kv DMA is exposed at small head_dim.
        ],
        out_specs=pl.BlockSpec((1, ts, D), lambda bh, qi, ki: (bh, qi, 0)),
        scratch_shapes=[
            pltpu.VMEM((ts, 1), jnp.float32),    # running max m
            pltpu.VMEM((ts, 1), jnp.float32),    # running denominator l
            pltpu.VMEM((ts, D), jnp.float32),    # f32 output accumulator
        ],
        compiler_params=pltpu.CompilerParams(
            dimension_semantics=("parallel", "parallel", "arbitrary")),
        cost_estimate=pl.CostEstimate(
            flops=4 * BH * Sp * Sp * D,
            transcendentals=BH * Sp * Sp,
            bytes_accessed=4 * BH * Sp * D * qkv.dtype.itemsize),
    )(qkv, qkv, qkv)

    if Sp != S:
        out = out[:, :S, :]
    return out
    # TODO(synk): for v5e lane-density, pack 2 heads per output block (or pad
    # head_dim to 128) so the output store's last dim is a full 128 multiple.


# ----------------------------------------------------------------------------
# Module wrapper (glue: head split / merge; hot paths are Pallas kernels)
# ----------------------------------------------------------------------------
def init_visual_attention_params(key, embed_dim):
    k1, k2, k3, k4 = jax.random.split(key, 4)
    scale = 1.0 / math.sqrt(embed_dim)
    return {
        # weights stored as (in_dim, out_dim); applied as x @ W + b
        "in_w": jax.random.normal(k1, (embed_dim, 3 * embed_dim), jnp.float32) * scale,
        "in_b": jax.random.normal(k2, (3 * embed_dim,), jnp.float32) * scale,
        "out_w": jax.random.normal(k3, (embed_dim, embed_dim), jnp.float32) * scale,
        "out_b": jax.random.normal(k4, (embed_dim,), jnp.float32) * scale,
    }


def visual_attention_forward(params, query, key, value, num_heads):
    # query/key/value: [sq, b, h]; module only supports self-attention.
    del key, value
    sq, b, h = query.shape
    d = h // num_heads

    # Fold 1/sqrt(d) into the q columns of in_proj (weight-sized op; would be
    # precomputed once at parameter-load time in a real model).
    col = jnp.arange(3 * h)
    q_cols = (col % (3 * d)) < d
    scale = jnp.where(q_cols, 1.0 / math.sqrt(d), 1.0).astype(params["in_w"].dtype)
    in_w = params["in_w"] * scale[None, :]
    in_b = params["in_b"] * scale

    # in_proj: (sq*b, h) @ (h, 3h) + (3h)   [reshape is a free contiguous merge]
    mixed = linear(query.reshape(sq * b, h), in_w, in_b)           # (sq*b, 3h)

    # Pack to (3, b*nh, sq, d) with a single transpose; the attention kernel
    # reads q/k/v from this one array via its BlockSpec index maps.
    qkv = mixed.reshape(sq, b, num_heads, 3, d)
    qkv = qkv.transpose(3, 1, 2, 0, 4).reshape(3, b * num_heads, sq, d)
    # TODO(synk): have the in_proj kernel emit this layout directly and fuse
    # out_proj into the attention epilogue to remove the remaining two XLA
    # transposes over the activations.

    ctx = flash_attention(qkv)                                     # (b*nh, sq, d)

    # (b, nh, sq, d) -> (sq, b, h), then out_proj.
    ctx = ctx.reshape(b, num_heads, sq, d).transpose(2, 0, 1, 3).reshape(sq * b, h)
    out = linear(ctx, params["out_w"], params["out_b"])
    return out.reshape(sq, b, h)


# ----------------------------------------------------------------------------
# Pure-JAX reference (correctness check; emulates bf16 MXU operands, f32 acc)
# ----------------------------------------------------------------------------
def reference_forward(params, query, num_heads):
    sq, b, h = query.shape
    d = h // num_heads
    norm = math.sqrt(d)

    def mm(a, w):
        return jnp.dot(a.astype(jnp.bfloat16), w.astype(jnp.bfloat16),
                       preferred_element_type=jnp.float32)

    mixed = mm(query.reshape(sq * b, h), params["in_w"]) + params["in_b"]
    mixed = mixed.reshape(sq, b, num_heads, 3 * d)
    q, k, v = jnp.split(mixed, 3, axis=-1)
    q = q.reshape(sq, b * num_heads, d).transpose(1, 0, 2)
    k = k.reshape(sq, b * num_heads, d).transpose(1, 0, 2)
    v = v.reshape(sq, b * num_heads, d).transpose(1, 0, 2)
    scores = jnp.einsum("bqd,bkd->bqk", (q / norm).astype(jnp.bfloat16),
                        k.astype(jnp.bfloat16),
                        preferred_element_type=jnp.float32)
    probs = jax.nn.softmax(scores, axis=-1)
    ctx = jnp.einsum("bqk,bkd->bqd", probs.astype(jnp.bfloat16),
                     v.astype(jnp.bfloat16),
                     preferred_element_type=jnp.float32)
    ctx = ctx.reshape(b, num_heads, sq, d).transpose(2, 0, 1, 3).reshape(sq * b, h)
    return (mm(ctx, params["out_w"]) + params["out_b"]).reshape(sq, b, h)


if __name__ == "__main__":
    seq, batch, embed_dim, num_heads = 8, 2, 32, 4

    root = jax.random.PRNGKey(0)
    k_params, k_x = jax.random.split(root)
    params = init_visual_attention_params(k_params, embed_dim)

    query = jax.random.normal(k_x, (seq, batch, embed_dim), jnp.float32)
    # self-attention: key == value == query
    out = visual_attention_forward(params, query, query, query, num_heads)
    out = jax.block_until_ready(out)

    ref = reference_forward(params, query, num_heads)
    assert out.shape == (seq, batch, embed_dim)
    assert jnp.allclose(out, ref, atol=2e-2, rtol=2e-2), "mismatch vs reference"

    print("KERNEL_OK")
</pallas_src>

<mosaic_0001>
module attributes {stable_mosaic.version = 11 : i64} {
  func.func @_linear_kernel(%arg0: i32, %arg1: i32, %arg2: i32, %arg3: memref<16x32xf32, #tpu.memory_space<vmem>>, %arg4: memref<32x96xf32, #tpu.memory_space<vmem>>, %arg5: memref<1x96xf32, #tpu.memory_space<vmem>>, %arg6: memref<16x96xf32, #tpu.memory_space<vmem>>, %arg7: memref<16x96xf32, #tpu.memory_space<vmem>>) attributes {dimension_semantics = [#tpu.dimension_semantics<parallel>, #tpu.dimension_semantics<parallel>, #tpu.dimension_semantics<arbitrary>], iteration_bounds = array<i64: 1, 1, 1>, scalar_prefetch = 0 : i64, scratch_operands = 1 : i64, tpu.core_type = #tpu.core_type<tc>, window_params = [{transform_indices = @transform_0, window_bounds = array<i64: 16, 32>}, {transform_indices = @transform_1, window_bounds = array<i64: 32, 96>}, {transform_indices = @transform_2, window_bounds = array<i64: 1, 96>}, {transform_indices = @transform_3, window_bounds = array<i64: 16, 96>}]} {
    %c0_i32 = arith.constant 0 : i32
    %0 = arith.cmpi eq, %arg2, %c0_i32 : i32
    %1 = arith.extui %0 : i1 to i32
    %c0_i32_0 = arith.constant 0 : i32
    %2 = arith.cmpi ne, %1, %c0_i32_0 : i32
    scf.if %2 {
      %cst_10 = arith.constant 0.000000e+00 : f32
      %14 = vector.broadcast %cst_10 : f32 to vector<16x96xf32>
      %c0_11 = arith.constant 0 : index
      %c0_12 = arith.constant 0 : index
      %15 = vector.load %arg7[%c0_11, %c0_12] : memref<16x96xf32, #tpu.memory_space<vmem>>, vector<16x96xf32>
      tpu.vector_store %arg7[%c0_11, %c0_12], %14 {strides = array<i32>} : memref<16x96xf32, #tpu.memory_space<vmem>>, vector<16x96xf32>,
    } else {
    }
    %c0 = arith.constant 0 : index
    %c0_1 = arith.constant 0 : index
    %3 = vector.load %arg7[%c0, %c0_1] : memref<16x96xf32, #tpu.memory_space<vmem>>, vector<16x96xf32>
    %c0_2 = arith.constant 0 : index
    %c0_3 = arith.constant 0 : index
    %4 = vector.load %arg3[%c0_2, %c0_3] : memref<16x32xf32, #tpu.memory_space<vmem>>, vector<16x32xf32>
    %5 = arith.truncf %4 : vector<16x32xf32> to vector<16x32xbf16>
    %c0_4 = arith.constant 0 : index
    %c0_5 = arith.constant 0 : index
    %6 = vector.load %arg4[%c0_4, %c0_5] : memref<32x96xf32, #tpu.memory_space<vmem>>, vector<32x96xf32>
    %7 = arith.truncf %6 : vector<32x96xf32> to vector<32x96xbf16>
    %cst = arith.constant dense<0.000000e+00> : vector<16x96xf32>
    %8 = tpu.matmul %5, %7, %cst {dimension_numbers = #tpu.dot_dimension_numbers<[1], [0], [0], [1], [0, 0, 1, 1], [], []>} : vector<16x32xbf16>, vector<32x96xbf16>, vector<16x96xf32> -> vector<16x96xf32>
    %9 = arith.addf %3, %8 : vector<16x96xf32>
    %c0_6 = arith.constant 0 : index
    %c0_7 = arith.constant 0 : index
    %10 = vector.load %arg7[%c0_6, %c0_7] : memref<16x96xf32, #tpu.memory_space<vmem>>, vector<16x96xf32>
    tpu.vector_store %arg7[%c0_6, %c0_7], %9 {strides = array<i32>} : memref<16x96xf32, #tpu.memory_space<vmem>>, vector<16x96xf32>,
    %c0_i32_8 = arith.constant 0 : i32
    %11 = arith.cmpi eq, %arg2, %c0_i32_8 : i32
    %12 = arith.extui %11 : i1 to i32
    %c0_i32_9 = arith.constant 0 : i32
    %13 = arith.cmpi ne, %12, %c0_i32_9 : i32
    scf.if %13 {
      %c0_10 = arith.constant 0 : index
      %c0_11 = arith.constant 0 : index
      %14 = vector.load %arg7[%c0_10, %c0_11] : memref<16x96xf32, #tpu.memory_space<vmem>>, vector<16x96xf32>
      %c0_12 = arith.constant 0 : index
      %c0_13 = arith.constant 0 : index
      %15 = vector.load %arg5[%c0_12, %c0_13] : memref<1x96xf32, #tpu.memory_space<vmem>>, vector<1x96xf32>
      %16 = vector.broadcast %15 : vector<1x96xf32> to vector<16x96xf32>
      %17 = arith.addf %14, %16 : vector<16x96xf32>
      %c0_14 = arith.constant 0 : index
      %c0_15 = arith.constant 0 : index
      %18 = vector.load %arg6[%c0_14, %c0_15] : memref<16x96xf32, #tpu.memory_space<vmem>>, vector<16x96xf32>
      tpu.vector_store %arg6[%c0_14, %c0_15], %17 {strides = array<i32>} : memref<16x96xf32, #tpu.memory_space<vmem>>, vector<16x96xf32>,
    } else {
    }
    return
  }
  func.func @transform_0(%arg0: i32, %arg1: i32, %arg2: i32) -> (i32, i32) {
    %c0_i32 = arith.constant 0 : i32
    return %arg0, %arg2 : i32, i32
  }
  func.func @transform_1(%arg0: i32, %arg1: i32, %arg2: i32) -> (i32, i32) {
    %c0_i32 = arith.constant 0 : i32
    return %arg2, %arg1 : i32, i32
  }
  func.func @transform_2(%arg0: i32, %arg1: i32, %arg2: i32) -> (i32, i32) {
    %c0_i32 = arith.constant 0 : i32
    %c0_i32_0 = arith.constant 0 : i32
    return %c0_i32, %arg1 : i32, i32
  }
  func.func @transform_3(%arg0: i32, %arg1: i32, %arg2: i32) -> (i32, i32) {
    %c0_i32 = arith.constant 0 : i32
    return %arg0, %arg1 : i32, i32
  }
}

</mosaic_0001>

<llo_original>
// kernel: tpu_custom_call.1
$region0: #{tpu_custom_call.1}
  #allocation0 [shape = 'u32[]', space=smem, size = 0x4, offset = 0x4, fixed_abs, tag = 'smem constant byte address 0x4 - core index']
  #allocation1 [shape = 'u32[144,128]{1,0:T(1,128)}', space=vmem, size = 0x12000, scoped, tag = 'internal scratch']
  #allocation2 [shape = 'f32[16,96]{1,0:T(8,128)}', space=vmem, size = 0x2000, scoped, tag = 'scratch operand']
  %s0 = inlined_call_operand.hbm [shape: f32[16,32], index: 0, kind: input, shape index: {}]
  %s1 = inlined_call_operand.hbm [shape: f32[32,96], index: 1, kind: input, shape index: {}]
  %s2 = inlined_call_operand.vmem [shape: f32[1,96], index: 2, kind: input, shape index: {}]
  %s3 = inlined_call_operand.hbm [shape: f32[16,96], index: 3, kind: output, shape index: {}]
  %s4 = sld [smem:[#allocation0]]
  $region38: #{tpu_custom_call.1} parent=0
    _
  %s6 = ssub.s32 1, %s4
  %s7 = scalar_select 0, %s6, %s4
  $region1: #{tpu_custom_call.1} parent=0
    #allocation3 [shape = 'u8[8192]{0}', space=vmem, size = 0x2000, scoped, tag = 'input window, operand 0, single buffered']
    #allocation4 [shape = 's32[1]{0}', space=sflag, size = 0x4, scoped, tag = 'scoped memory for tpu_custom_call.1']
    #allocation5 [shape = 's32[1]{0}', space=sflag, size = 0x4, scoped, tag = 'scoped memory for tpu_custom_call.1']
    #allocation6 [shape = 'u8[16384]{0}', space=vmem, size = 0x4000, scoped, tag = 'input window, operand 1, single buffered']
    #allocation7 [shape = 's32[1]{0}', space=sflag, size = 0x4, scoped, tag = 'scoped memory for tpu_custom_call.1']
    #allocation8 [shape = 'u8[8192]{0}', space=vmem, size = 0x2000, scoped, tag = 'output window, operand 0, single buffered']
    %8 = vsyncpa [#allocation4], 0
    %9 = vsyncpa [#allocation7], 0
    %10 = vsyncpa [#allocation5], 0
    // Predicated region
    $region2: #{tpu_custom_call.1} parent=1 // pred_check
      _
    $region3: #{tpu_custom_call.1} parent=1 // pred_check_branch
      %12 = sbr.rel (0) target = $region5
    $region4: #{tpu_custom_call.1} parent=1 // pred_region
      %s14 = ssub.s32 256, 256
      %15 = vsyncadd [#allocation4], %s14
      %s16 = sshll.u32 [#allocation3], 4
      %s17 = int_to_ptr.vmem [resolvable:$true] %s16
      %22 = dma.hbm_to_vmem [thread:$0]  %s0, 256, %s17, [#allocation4], 128, 128, 8
    $region5: #{tpu_custom_call.1} parent=1 // pred_fallthru
      _
    // Predicated region
    $region6: #{tpu_custom_call.1} parent=1 // pred_check
      _
    $region7: #{tpu_custom_call.1} parent=1 // pred_check_branch
      %24 = sbr.rel (0) target = $region9
    $region8: #{tpu_custom_call.1} parent=1 // pred_region
      %s26 = ssub.s32 512, 512
      %27 = vsyncadd [#allocation7], %s26
      %s28 = sshll.u32 [#allocation6], 4
      %s29 = int_to_ptr.vmem [resolvable:$true] %s28
      %34 = dma.hbm_to_vmem [thread:$0]  %s1, 512, %s29, [#allocation7], 128, 128, 8
    $region9: #{tpu_custom_call.1} parent=1 // pred_fallthru
      _
    // Predicated region
    $region10: #{tpu_custom_call.1} parent=1 // pred_check
      _
    $region11: #{tpu_custom_call.1} parent=1 // pred_check_branch
      %36 = sbr.rel (0) target = $region13
    $region12: #{tpu_custom_call.1} parent=1 // pred_region
      _
    $region13: #{tpu_custom_call.1} parent=1 // pred_fallthru
      _
    // Predicated region
    $region14: #{tpu_custom_call.1} parent=1 // pred_check
      _
    $region15: #{tpu_custom_call.1} parent=1 // pred_check_branch
      %38 = sbr.rel (0) target = $region17
    $region16: #{tpu_custom_call.1} parent=1 // pred_region
      %39 = dma.done [#allocation4], 256
    $region17: #{tpu_custom_call.1} parent=1 // pred_fallthru
      _
    // Predicated region
    $region18: #{tpu_custom_call.1} parent=1 // pred_check
      _
    $region19: #{tpu_custom_call.1} parent=1 // pred_check_branch
      %41 = sbr.rel (0) target = $region21
    $region20: #{tpu_custom_call.1} parent=1 // pred_region
      %42 = dma.done [#allocation7], 512
    $region21: #{tpu_custom_call.1} parent=1 // pred_fallthru
      _
    %p44 = scmp.eq.s32.totalorder 0, 0
    // Predicated region
    $region22: #{tpu_custom_call.1} parent=1 // pred_check
      %p45 = pneg %p44
    $region23: #{tpu_custom_call.1} parent=1 // pred_check_branch
      %47 = sbr.rel (%p45) target = $region25
    $region24: #{tpu_custom_call.1} parent=1 // pred_region
      %vm48 = vcmask 785408
      %49 = vst.msk [vmem:[#allocation2] sm:$0xff] %vm48, 0.0
      %50 = vst.msk [vmem:[#allocation2 + $0x8] sm:$0xff] %vm48, 0.0
    $region25: #{tpu_custom_call.1} parent=1 // pred_fallthru
      _
    %v51 = vld [vmem:[#allocation2] sm:$0xff]
    %v52 = vld [vmem:[#allocation2 + $0x8] sm:$0xff]
    %v53 = vld [vmem:[#allocation3] sm:$0xff]
    %v54 = vld [vmem:[#allocation3 + $0x8] sm:$0xff]
    %v55 = vpack.c.bf16 %v54, %v53
    %v56 = vld [vmem:[#allocation6] sm:$0xff]
    %v57 = vld [vmem:[#allocation6 + $0x8] sm:$0xff]
    %v58 = vld [vmem:[#allocation6 + $0x10] sm:$0xff]
    %v59 = vld [vmem:[#allocation6 + $0x18] sm:$0xff]
    %v60 = vpack.c.bf16 %v57, %v56
    %v61 = vpack.c.bf16 %v59, %v58
    %vm62 = vcmask 261120
    %v64 = vsel %vm62, %v55, 0
    %66 = vmatprep.subr.bf16.mxu0 0
    %67 = vmatpush1.bf16.msra.mxu0 %v60
    %68 = vmatprep.subr.bf16.mxu0 0
    %69 = vmatpush1.bf16.msra.mxu0 %v61
    %70 = vmatprep.subr.bf16.mxu0 0
    %71 = vmatpush1.bf16.msra.mxu0 0
    %72 = vmatprep.subr.bf16.mxu0 0
    %73 = vmatpush1.bf16.msra.mxu0 0
    %74 = vmatprep.subr.bf16.mxu0 0
    %75 = vmatpush1.bf16.msra.mxu0 0
    %76 = vmatprep.subr.bf16.mxu0 0
    %77 = vmatpush1.bf16.msra.mxu0 0
    %78 = vmatprep.subr.bf16.mxu0 0
    %79 = vmatpush1.bf16.msra.mxu0 0
    %80 = vmatprep.subr.bf16.mxu0 0
    %81 = vmatpush1.bf16.msra.mxu0 0
    %82 = vmatprep.subr.bf16.mxu0 0
    %83 = vmatpush1.bf16.msra.mxu0 0
    %84 = vmatprep.subr.bf16.mxu0 0
    %85 = vmatpush1.bf16.msra.mxu0 0
    %86 = vmatprep.subr.bf16.mxu0 0
    %87 = vmatpush1.bf16.msra.mxu0 0
    %88 = vmatprep.subr.bf16.mxu0 0
    %89 = vmatpush1.bf16.msra.mxu0 0
    %90 = vmatprep.subr.bf16.mxu0 0
    %91 = vmatpush1.bf16.msra.mxu0 0
    %92 = vmatprep.subr.bf16.mxu0 0
    %93 = vmatpush1.bf16.msra.mxu0 0
    %94 = vmatprep.subr.bf16.mxu0 0
    %95 = vmatpush1.bf16.msra.mxu0 0
    %96 = vmatprep.subr.bf16.mxu0 0
    %97 = vmatpush1.bf16.msra.mxu0 0
    %98 = vmatprep.mubr.bf16.mxu0 0
    %99 = vmatmul.mubr.bf16.gmra.mrb[0].mxu0 %v64
    %v100 = vpop.f32.mrb[0].mxu0
    %v101 = vadd.f32 0.0, %v100
    %v102 = vpop.f32.mrb[0].mxu0
    %v103 = vpop.f32.mrb[0].mxu0
    %v104 = vadd.f32 0.0, %v103
    %v105 = vpop.f32.mrb[0].mxu0
    %106 = vdwg.mxu0
    %v107 = vadd.f32 %v51, %v101
    %v108 = vadd.f32 %v52, %v104
    %vm109 = vcmask 785408
    %110 = vst.msk [vmem:[#allocation2] sm:$0xff] %vm109, %v107
    %111 = vst.msk [vmem:[#allocation2 + $0x8] sm:$0xff] %vm109, %v108
    // Predicated region
    $region26: #{tpu_custom_call.1} parent=1 // pred_check
      %p112 = pneg %p44
    $region27: #{tpu_custom_call.1} parent=1 // pred_check_branch
      %114 = sbr.rel (%p112) target = $region29
    $region28: #{tpu_custom_call.1} parent=1 // pred_region
      %v115 = vld [vmem:[#allocation2] sm:$0xff]
      %v116 = vld [vmem:[#allocation2 + $0x8] sm:$0xff]
      %v117 = vld [vmem:[%s2] sm:$0x1]
      %v119 = vlaneseq
      %v120 = vshrl.u32 %v119, 7
      %v121 = vsub.s32 0, %v120
      %v122 = vrot.slane %v117, %v121
      %v124 = vadd.f32 %v115, %v122
      %v125 = vadd.f32 %v116, %v122
      %126 = vst.msk [vmem:[#allocation8] sm:$0xff] %vm109, %v124
      %127 = vst.msk [vmem:[#allocation8 + $0x8] sm:$0xff] %vm109, %v125
    $region29: #{tpu_custom_call.1} parent=1 // pred_fallthru
      _
    // Predicated region
    $region30: #{tpu_custom_call.1} parent=1 // pred_check
      _
    $region31: #{tpu_custom_call.1} parent=1 // pred_check_branch
      %129 = sbr.rel (0) target = $region33
    $region32: #{tpu_custom_call.1} parent=1 // pred_region
      %s131 = ssub.s32 256, 256
      %132 = vsyncadd [#allocation5], %s131
      %s133 = sshll.u32 [#allocation8], 4
      %s134 = int_to_ptr.vmem [resolvable:$true] %s133
      %139 = dma.vmem_to_hbm [thread:$0]  %s134, 256, %s3, [#allocation5], 128, 128, 8
    $region33: #{tpu_custom_call.1} parent=1 // pred_fallthru
      _
    // Predicated region
    $region34: #{tpu_custom_call.1} parent=1 // pred_check
      _
    $region35: #{tpu_custom_call.1} parent=1 // pred_check_branch
      %141 = sbr.rel (0) target = $region37
    $region36: #{tpu_custom_call.1} parent=1 // pred_region
      %142 = dma.done [#allocation5], 256
    $region37: #{tpu_custom_call.1} parent=1 // pred_fallthru
      _
    %143 = vsyncpa [#allocation4], 1
    %144 = vsyncpa [#allocation7], 1
    %145 = vsyncpa [#allocation5], 1

</llo_original>
